<compile_context>
chip_gen: v7x
topology: tpu7x:2x2x1
jax: 0.10.0
libtpu: 0.0.40
codegen_flags: <defaults>
</compile_context>

<pallas_src>
import functools

import jax
import jax.numpy as jnp
from jax.experimental import pallas as pl
from jax.experimental.pallas import tpu as pltpu

_LANE = 128
_SUBLANE = 8


def _round_up(x: int, m: int) -> int:
    return (x + m - 1) // m * m


def _pad_to(a, shape):
    pads = [(0, t - s) for s, t in zip(a.shape, shape)]
    return jnp.pad(a, pads) if any(p for _, p in pads) else a


def _vmem_capacity_bytes() -> int:
    """Physical VMEM per TensorCore (128 MiB v5e/v6e, 64 MiB v7x)."""
    try:
        info = pltpu.get_tpu_info()
        cap = int(getattr(info, "vmem_capacity_bytes", 0) or 0)
        if cap > 0:
            return cap
    except Exception:
        pass
    return 64 * 1024 * 1024  # conservative default (v7x per-TC VMEM)


def _num_tensorcores() -> int:
    """Heuristic TC-per-chip count (v7x has 2; v4/v5p megacore also benefits)."""
    try:
        kind = jax.devices()[0].device_kind.lower()
    except Exception:
        return 1
    for tag in ("v7", "7x", "v4", "v5p"):
        if tag in kind:
            return 2
    return 1


def _mlp_kernel(x_ref, w1_ref, b1_ref, w2_ref, b2_ref, w3_ref, b3_ref, o_ref,
                *, apply_sigmoid: bool):
    """Whole forward pass on one batch tile; all operands resident in VMEM."""
    w_dtype = w1_ref.dtype                       # MXU input dtype (bf16 or f32)

    # fc1 + leaky_relu(0.2): f32 accumulation, f32 bias add, VPU max (2 ops).
    h = jnp.dot(x_ref[...].astype(w_dtype), w1_ref[...],
                preferred_element_type=jnp.float32) + b1_ref[...]
    h = jnp.maximum(h, 0.2 * h)

    # fc2 + leaky_relu(0.2)
    h = jnp.dot(h.astype(w_dtype), w2_ref[...],
                preferred_element_type=jnp.float32) + b2_ref[...]
    h = jnp.maximum(h, 0.2 * h)

    # fc3 + output activation (sigmoid on the EUP iff out_size == 1).
    h = jnp.dot(h.astype(w_dtype), w3_ref[...],
                preferred_element_type=jnp.float32) + b3_ref[...]
    if apply_sigmoid:
        h = jax.nn.sigmoid(h)

    o_ref[...] = h.astype(o_ref.dtype)


def predictor_forward(x, params, *, compute_dtype=jnp.bfloat16, out_dtype=None,
                      max_block_m=None):
    """x: (B, in_size). params: dict of transposed weights (in, out) / biases (1, out)."""
    w1, b1 = params["w1"], params["b1"]
    w2, b2 = params["w2"], params["b2"]
    w3, b3 = params["w3"], params["b3"]

    B, in_size = x.shape
    model_size = w1.shape[1]
    out_size = w3.shape[1]
    apply_sigmoid = out_size == 1
    out_dtype = jnp.dtype(x.dtype if out_dtype is None else out_dtype)

    # Lane-pad hidden / output feature dims (zero pads are exact). x's feature
    # dim is left untouched: as a full-array block dim it is exempt from the
    # 128 rule, and skipping the pad avoids an extra wrapper pass over x.
    mdl_p = _round_up(model_size, _LANE)
    out_p = _round_up(out_size, _LANE)           # lane-dense output slab

    w_itemsize = jnp.dtype(compute_dtype).itemsize
    x_itemsize = jnp.dtype(x.dtype).itemsize
    o_itemsize = out_dtype.itemsize

    w1_p = _pad_to(w1, (in_size, mdl_p)).astype(compute_dtype)
    w2_p = _pad_to(w2, (mdl_p, mdl_p)).astype(compute_dtype)
    w3_p = _pad_to(w3, (mdl_p, out_p)).astype(compute_dtype)
    b1_p = _pad_to(b1, (1, mdl_p)).astype(jnp.float32)   # biases added in f32
    b2_p = _pad_to(b2, (1, mdl_p)).astype(jnp.float32)
    b3_p = _pad_to(b3, (1, out_p)).astype(jnp.float32)

    # ---- VMEM-budget-aware batch tile (generation-aware via queried capacity).
    vmem_cap = _vmem_capacity_bytes()
    if max_block_m is None:
        max_block_m = 2048 if vmem_cap >= 100 * 1024 * 1024 else 1024

    resident_bytes = (w_itemsize * (in_size * mdl_p + mdl_p * mdl_p + mdl_p * out_p)
                      + 4 * (2 * mdl_p + out_p))         # single-buffered invariants
    per_row_bytes = (2 * in_size * x_itemsize            # double-buffered x tile
                     + 2 * out_p * o_itemsize            # double-buffered out tile
                     + 3 * 4 * mdl_p)                    # f32 intermediate activations
    budget = int(0.8 * vmem_cap)
    # TODO(synk): add a tiled-weights (split-K/N with f32 VMEM accumulator)
    # fallback for model_size large enough that resident weights alone exceed
    # VMEM (~4096 on v7x); the current design keeps all three layers resident.
    cap_rows = max(_SUBLANE,
                   ((budget - resident_bytes) // max(per_row_bytes, 1)
                    // _SUBLANE) * _SUBLANE)
    block_m = min(int(cap_rows), int(max_block_m), _round_up(B, _SUBLANE))

    # v7x (2 TensorCores/chip) / megacore: ensure the grid has >= 2 parallel steps.
    if _num_tensorcores() >= 2 and B >= 2 * _SUBLANE:
        block_m = min(block_m, _round_up(pl.cdiv(B, 2), _SUBLANE))
    if block_m >= B:
        block_m = B                      # one full-batch tile (full-dim block)
    grid_m = pl.cdiv(B, block_m)         # ragged last tile handled by Pallas

    # ---- advisory cost estimate for XLA's scheduler.
    flops = 2 * B * (in_size * mdl_p + mdl_p * mdl_p + mdl_p * out_p)
    transcendentals = B * out_p if apply_sigmoid else 0
    bytes_accessed = int(B * in_size * x_itemsize + resident_bytes
                         + B * out_p * o_itemsize)
    cost = pl.CostEstimate(flops=int(flops), transcendentals=int(transcendentals),
                           bytes_accessed=bytes_accessed)

    # ---- scoped-VMEM limit: raise only past the (conservative) 16 MiB default,
    #      never past 90% of the queried physical capacity (64 MiB on v7x).
    est_vmem = 2 * resident_bytes + block_m * per_row_bytes + (1 << 20)
    vmem_limit = None
    if est_vmem > 16 * 1024 * 1024:
        vmem_limit = int(min(est_vmem * 1.3, 0.9 * vmem_cap))

    kernel = functools.partial(_mlp_kernel, apply_sigmoid=apply_sigmoid)

    def run(single_buffer_weights: bool):
        extra = ({"pipeline_mode": pl.Buffered(1)} if single_buffer_weights else {})

        def rspec(shape):
            # Grid-invariant operand: a single buffer halves resident VMEM.
            return pl.BlockSpec(shape, lambda i: (0, 0), **extra)

        in_specs = [
            pl.BlockSpec((block_m, in_size), lambda i: (i, 0)),   # x tile
            rspec((in_size, mdl_p)), rspec((1, mdl_p)),           # W1^T, b1
            rspec((mdl_p, mdl_p)),   rspec((1, mdl_p)),           # W2^T, b2
            rspec((mdl_p, out_p)),   rspec((1, out_p)),           # W3^T, b3
        ]
        return pl.pallas_call(
            kernel,
            out_shape=jax.ShapeDtypeStruct((B, out_p), out_dtype),
            grid=(grid_m,),
            in_specs=in_specs,
            out_specs=pl.BlockSpec((block_m, out_p), lambda i: (i, 0)),
            compiler_params=pltpu.CompilerParams(
                dimension_semantics=("parallel",),
                vmem_limit_bytes=vmem_limit),
            cost_estimate=cost,
        )(x, w1_p, b1_p, w2_p, b2_p, w3_p, b3_p)

    try:
        out_padded = run(True)
    except Exception:
        # Fallback for jax versions where pl.Buffered(1) single-buffering of
        # grid-invariant blocks is rejected by the TPU pipeline.
        out_padded = run(False)

    # Wrapper-side slice back to the logical output width (layout plumbing).
    return out_padded[:, :out_size]


def init_predictor_params(key, in_size, out_size, model_size):
    """Deterministic synthetic params. Weights stored transposed: (in, out)."""
    k = jax.random.split(key, 6)
    scale1 = 1.0 / jnp.sqrt(in_size)
    scale2 = 1.0 / jnp.sqrt(model_size)
    return {
        "w1": jax.random.uniform(k[0], (in_size, model_size), jnp.float32,
                                 -scale1, scale1),
        "b1": jax.random.uniform(k[1], (1, model_size), jnp.float32,
                                 -scale1, scale1),
        "w2": jax.random.uniform(k[2], (model_size, model_size), jnp.float32,
                                 -scale2, scale2),
        "b2": jax.random.uniform(k[3], (1, model_size), jnp.float32,
                                 -scale2, scale2),
        "w3": jax.random.uniform(k[4], (model_size, out_size), jnp.float32,
                                 -scale2, scale2),
        "b3": jax.random.uniform(k[5], (1, out_size), jnp.float32,
                                 -scale2, scale2),
    }


def predictor_ref(x, params, out_size):
    """Pure-JAX reference reproducing the PyTorch forward."""
    h = x @ params["w1"] + params["b1"]
    h = jnp.where(h >= 0, h, 0.2 * h)
    h = h @ params["w2"] + params["b2"]
    h = jnp.where(h >= 0, h, 0.2 * h)
    h = h @ params["w3"] + params["b3"]
    return jax.nn.sigmoid(h) if out_size == 1 else h


if __name__ == "__main__":
    key = jax.random.PRNGKey(0)
    batch, in_size, model_size = 16, 32, 32

    ok = True
    # Case 1: out_size > 1  -> Identity output activation.
    # Case 2: out_size == 1 -> sigmoid output activation.
    for out_size in (4, 1):
        kx, kp, key = jax.random.split(key, 3)
        x = jax.random.normal(kx, (batch, in_size), jnp.float32)
        params = init_predictor_params(kp, in_size, out_size, model_size)
        ref = predictor_ref(x, params, out_size)

        # f32 MXU path (bit-comparable to the reference).
        out_f32 = jax.block_until_ready(
            predictor_forward(x, params, compute_dtype=jnp.float32))
        if out_f32.shape != (batch, out_size) or not jnp.allclose(
                out_f32, ref, atol=1e-4, rtol=1e-4):
            ok = False

        # Default bf16 MXU path (f32 accumulation) — looser tolerance.
        out_bf16 = jax.block_until_ready(predictor_forward(x, params))
        if out_bf16.shape != (batch, out_size) or not jnp.allclose(
                out_bf16, ref, atol=5e-2, rtol=5e-2):
            ok = False

    if ok:
        print("KERNEL_OK")
</pallas_src>

<mosaic_0001>
module attributes {stable_mosaic.version = 11 : i64} {
  func.func @_mlp_kernel(%arg0: i32, %arg1: memref<16x32xf32, #tpu.memory_space<vmem>>, %arg2: memref<32x128xf32, #tpu.memory_space<vmem>>, %arg3: memref<1x128xf32, #tpu.memory_space<vmem>>, %arg4: memref<128x128xf32, #tpu.memory_space<vmem>>, %arg5: memref<1x128xf32, #tpu.memory_space<vmem>>, %arg6: memref<128x128xf32, #tpu.memory_space<vmem>>, %arg7: memref<1x128xf32, #tpu.memory_space<vmem>>, %arg8: memref<16x128xf32, #tpu.memory_space<vmem>>) attributes {dimension_semantics = [#tpu.dimension_semantics<parallel>], iteration_bounds = array<i64: 1>, scalar_prefetch = 0 : i64, scratch_operands = 0 : i64, tpu.core_type = #tpu.core_type<tc>, window_params = [{transform_indices = @transform_0, window_bounds = array<i64: 16, 32>}, {pipeline_mode = #tpu.pipeline_mode<synchronous>, transform_indices = @transform_1, window_bounds = array<i64: 32, 128>}, {pipeline_mode = #tpu.pipeline_mode<synchronous>, transform_indices = @transform_2, window_bounds = array<i64: 1, 128>}, {pipeline_mode = #tpu.pipeline_mode<synchronous>, transform_indices = @transform_3, window_bounds = array<i64: 128, 128>}, {pipeline_mode = #tpu.pipeline_mode<synchronous>, transform_indices = @transform_4, window_bounds = array<i64: 1, 128>}, {pipeline_mode = #tpu.pipeline_mode<synchronous>, transform_indices = @transform_5, window_bounds = array<i64: 128, 128>}, {pipeline_mode = #tpu.pipeline_mode<synchronous>, transform_indices = @transform_6, window_bounds = array<i64: 1, 128>}, {transform_indices = @transform_7, window_bounds = array<i64: 16, 128>}]} {
    %c0 = arith.constant 0 : index
    %c0_0 = arith.constant 0 : index
    %0 = vector.load %arg1[%c0, %c0_0] : memref<16x32xf32, #tpu.memory_space<vmem>>, vector<16x32xf32>
    %c0_1 = arith.constant 0 : index
    %c0_2 = arith.constant 0 : index
    %1 = vector.load %arg2[%c0_1, %c0_2] : memref<32x128xf32, #tpu.memory_space<vmem>>, vector<32x128xf32>
    %cst = arith.constant dense<0.000000e+00> : vector<16x128xf32>
    %2 = tpu.matmul %0, %1, %cst {dimension_numbers = #tpu.dot_dimension_numbers<[1], [0], [0], [1], [0, 0, 1, 1], [], []>} : vector<16x32xf32>, vector<32x128xf32>, vector<16x128xf32> -> vector<16x128xf32>
    %c0_3 = arith.constant 0 : index
    %c0_4 = arith.constant 0 : index
    %3 = vector.load %arg3[%c0_3, %c0_4] : memref<1x128xf32, #tpu.memory_space<vmem>>, vector<1x128xf32>
    %4 = vector.broadcast %3 : vector<1x128xf32> to vector<16x128xf32>
    %5 = arith.addf %2, %4 : vector<16x128xf32>
    %cst_5 = arith.constant 2.000000e-01 : f32
    %6 = vector.broadcast %cst_5 : f32 to vector<16x128xf32>
    %7 = arith.mulf %6, %5 : vector<16x128xf32>
    %8 = arith.maximumf %5, %7 : vector<16x128xf32>
    %c0_6 = arith.constant 0 : index
    %c0_7 = arith.constant 0 : index
    %9 = vector.load %arg4[%c0_6, %c0_7] : memref<128x128xf32, #tpu.memory_space<vmem>>, vector<128x128xf32>
    %cst_8 = arith.constant dense<0.000000e+00> : vector<16x128xf32>
    %10 = tpu.matmul %8, %9, %cst_8 {dimension_numbers = #tpu.dot_dimension_numbers<[1], [0], [0], [1], [0, 0, 1, 1], [], []>} : vector<16x128xf32>, vector<128x128xf32>, vector<16x128xf32> -> vector<16x128xf32>
    %c0_9 = arith.constant 0 : index
    %c0_10 = arith.constant 0 : index
    %11 = vector.load %arg5[%c0_9, %c0_10] : memref<1x128xf32, #tpu.memory_space<vmem>>, vector<1x128xf32>
    %12 = vector.broadcast %11 : vector<1x128xf32> to vector<16x128xf32>
    %13 = arith.addf %10, %12 : vector<16x128xf32>
    %cst_11 = arith.constant 2.000000e-01 : f32
    %14 = vector.broadcast %cst_11 : f32 to vector<16x128xf32>
    %15 = arith.mulf %14, %13 : vector<16x128xf32>
    %16 = arith.maximumf %13, %15 : vector<16x128xf32>
    %c0_12 = arith.constant 0 : index
    %c0_13 = arith.constant 0 : index
    %17 = vector.load %arg6[%c0_12, %c0_13] : memref<128x128xf32, #tpu.memory_space<vmem>>, vector<128x128xf32>
    %cst_14 = arith.constant dense<0.000000e+00> : vector<16x128xf32>
    %18 = tpu.matmul %16, %17, %cst_14 {dimension_numbers = #tpu.dot_dimension_numbers<[1], [0], [0], [1], [0, 0, 1, 1], [], []>} : vector<16x128xf32>, vector<128x128xf32>, vector<16x128xf32> -> vector<16x128xf32>
    %c0_15 = arith.constant 0 : index
    %c0_16 = arith.constant 0 : index
    %19 = vector.load %arg7[%c0_15, %c0_16] : memref<1x128xf32, #tpu.memory_space<vmem>>, vector<1x128xf32>
    %20 = vector.broadcast %19 : vector<1x128xf32> to vector<16x128xf32>
    %21 = arith.addf %18, %20 : vector<16x128xf32>
    %c0_17 = arith.constant 0 : index
    %c0_18 = arith.constant 0 : index
    %22 = vector.load %arg8[%c0_17, %c0_18] : memref<16x128xf32, #tpu.memory_space<vmem>>, vector<16x128xf32>
    tpu.vector_store %arg8[%c0_17, %c0_18], %21 {strides = array<i32>} : memref<16x128xf32, #tpu.memory_space<vmem>>, vector<16x128xf32>,
    return
  }
  func.func @transform_0(%arg0: i32) -> (i32, i32) {
    %c0_i32 = arith.constant 0 : i32
    %c0_i32_0 = arith.constant 0 : i32
    return %arg0, %c0_i32 : i32, i32
  }
  func.func @transform_1(%arg0: i32) -> (i32, i32) {
    %c0_i32 = arith.constant 0 : i32
    %c0_i32_0 = arith.constant 0 : i32
    %c0_i32_1 = arith.constant 0 : i32
    return %c0_i32, %c0_i32_0 : i32, i32
  }
  func.func @transform_2(%arg0: i32) -> (i32, i32) {
    %c0_i32 = arith.constant 0 : i32
    %c0_i32_0 = arith.constant 0 : i32
    %c0_i32_1 = arith.constant 0 : i32
    return %c0_i32, %c0_i32_0 : i32, i32
  }
  func.func @transform_3(%arg0: i32) -> (i32, i32) {
    %c0_i32 = arith.constant 0 : i32
    %c0_i32_0 = arith.constant 0 : i32
    %c0_i32_1 = arith.constant 0 : i32
    return %c0_i32, %c0_i32_0 : i32, i32
  }
  func.func @transform_4(%arg0: i32) -> (i32, i32) {
    %c0_i32 = arith.constant 0 : i32
    %c0_i32_0 = arith.constant 0 : i32
    %c0_i32_1 = arith.constant 0 : i32
    return %c0_i32, %c0_i32_0 : i32, i32
  }
  func.func @transform_5(%arg0: i32) -> (i32, i32) {
    %c0_i32 = arith.constant 0 : i32
    %c0_i32_0 = arith.constant 0 : i32
    %c0_i32_1 = arith.constant 0 : i32
    return %c0_i32, %c0_i32_0 : i32, i32
  }
  func.func @transform_6(%arg0: i32) -> (i32, i32) {
    %c0_i32 = arith.constant 0 : i32
    %c0_i32_0 = arith.constant 0 : i32
    %c0_i32_1 = arith.constant 0 : i32
    return %c0_i32, %c0_i32_0 : i32, i32
  }
  func.func @transform_7(%arg0: i32) -> (i32, i32) {
    %c0_i32 = arith.constant 0 : i32
    %c0_i32_0 = arith.constant 0 : i32
    return %arg0, %c0_i32 : i32, i32
  }
}

module attributes {stable_mosaic.version = 11 : i64} {
  func.func @_mlp_kernel(%arg0: i32, %arg1: memref<16x32xf32, #tpu.memory_space<vmem>>, %arg2: memref<32x128xf32, #tpu.memory_space<vmem>>, %arg3: memref<1x128xf32, #tpu.memory_space<vmem>>, %arg4: memref<128x128xf32, #tpu.memory_space<vmem>>, %arg5: memref<1x128xf32, #tpu.memory_space<vmem>>, %arg6: memref<128x128xf32, #tpu.memory_space<vmem>>, %arg7: memref<1x128xf32, #tpu.memory_space<vmem>>, %arg8: memref<16x128xf32, #tpu.memory_space<vmem>>) attributes {dimension_semantics = [#tpu.dimension_semantics<parallel>], iteration_bounds = array<i64: 1>, scalar_prefetch = 0 : i64, scratch_operands = 0 : i64, tpu.core_type = #tpu.core_type<tc>, window_params = [{transform_indices = @transform_0, window_bounds = array<i64: 16, 32>}, {pipeline_mode = #tpu.pipeline_mode<synchronous>, transform_indices = @transform_1, window_bounds = array<i64: 32, 128>}, {pipeline_mode = #tpu.pipeline_mode<synchronous>, transform_indices = @transform_2, window_bounds = array<i64: 1, 128>}, {pipeline_mode = #tpu.pipeline_mode<synchronous>, transform_indices = @transform_3, window_bounds = array<i64: 128, 128>}, {pipeline_mode = #tpu.pipeline_mode<synchronous>, transform_indices = @transform_4, window_bounds = array<i64: 1, 128>}, {pipeline_mode = #tpu.pipeline_mode<synchronous>, transform_indices = @transform_5, window_bounds = array<i64: 128, 128>}, {pipeline_mode = #tpu.pipeline_mode<synchronous>, transform_indices = @transform_6, window_bounds = array<i64: 1, 128>}, {transform_indices = @transform_7, window_bounds = array<i64: 16, 128>}]} {
    %c0 = arith.constant 0 : index
    %c0_0 = arith.constant 0 : index
    %0 = vector.load %arg1[%c0, %c0_0] : memref<16x32xf32, #tpu.memory_space<vmem>>, vector<16x32xf32>
    %c0_1 = arith.constant 0 : index
    %c0_2 = arith.constant 0 : index
    %1 = vector.load %arg2[%c0_1, %c0_2] : memref<32x128xf32, #tpu.memory_space<vmem>>, vector<32x128xf32>
    %cst = arith.constant dense<0.000000e+00> : vector<16x128xf32>
    %2 = tpu.matmul %0, %1, %cst {dimension_numbers = #tpu.dot_dimension_numbers<[1], [0], [0], [1], [0, 0, 1, 1], [], []>} : vector<16x32xf32>, vector<32x128xf32>, vector<16x128xf32> -> vector<16x128xf32>
    %c0_3 = arith.constant 0 : index
    %c0_4 = arith.constant 0 : index
    %3 = vector.load %arg3[%c0_3, %c0_4] : memref<1x128xf32, #tpu.memory_space<vmem>>, vector<1x128xf32>
    %4 = vector.broadcast %3 : vector<1x128xf32> to vector<16x128xf32>
    %5 = arith.addf %2, %4 : vector<16x128xf32>
    %cst_5 = arith.constant 2.000000e-01 : f32
    %6 = vector.broadcast %cst_5 : f32 to vector<16x128xf32>
    %7 = arith.mulf %6, %5 : vector<16x128xf32>
    %8 = arith.maximumf %5, %7 : vector<16x128xf32>
    %c0_6 = arith.constant 0 : index
    %c0_7 = arith.constant 0 : index
    %9 = vector.load %arg4[%c0_6, %c0_7] : memref<128x128xf32, #tpu.memory_space<vmem>>, vector<128x128xf32>
    %cst_8 = arith.constant dense<0.000000e+00> : vector<16x128xf32>
    %10 = tpu.matmul %8, %9, %cst_8 {dimension_numbers = #tpu.dot_dimension_numbers<[1], [0], [0], [1], [0, 0, 1, 1], [], []>} : vector<16x128xf32>, vector<128x128xf32>, vector<16x128xf32> -> vector<16x128xf32>
    %c0_9 = arith.constant 0 : index
    %c0_10 = arith.constant 0 : index
    %11 = vector.load %arg5[%c0_9, %c0_10] : memref<1x128xf32, #tpu.memory_space<vmem>>, vector<1x128xf32>
    %12 = vector.broadcast %11 : vector<1x128xf32> to vector<16x128xf32>
    %13 = arith.addf %10, %12 : vector<16x128xf32>
    %cst_11 = arith.constant 2.000000e-01 : f32
    %14 = vector.broadcast %cst_11 : f32 to vector<16x128xf32>
    %15 = arith.mulf %14, %13 : vector<16x128xf32>
    %16 = arith.maximumf %13, %15 : vector<16x128xf32>
    %c0_12 = arith.constant 0 : index
    %c0_13 = arith.constant 0 : index
    %17 = vector.load %arg6[%c0_12, %c0_13] : memref<128x128xf32, #tpu.memory_space<vmem>>, vector<128x128xf32>
    %cst_14 = arith.constant dense<0.000000e+00> : vector<16x128xf32>
    %18 = tpu.matmul %16, %17, %cst_14 {dimension_numbers = #tpu.dot_dimension_numbers<[1], [0], [0], [1], [0, 0, 1, 1], [], []>} : vector<16x128xf32>, vector<128x128xf32>, vector<16x128xf32> -> vector<16x128xf32>
    %c0_15 = arith.constant 0 : index
    %c0_16 = arith.constant 0 : index
    %19 = vector.load %arg7[%c0_15, %c0_16] : memref<1x128xf32, #tpu.memory_space<vmem>>, vector<1x128xf32>
    %20 = vector.broadcast %19 : vector<1x128xf32> to vector<16x128xf32>
    %21 = arith.addf %18, %20 : vector<16x128xf32>
    %c0_17 = arith.constant 0 : index
    %c0_18 = arith.constant 0 : index
    %22 = vector.load %arg8[%c0_17, %c0_18] : memref<16x128xf32, #tpu.memory_space<vmem>>, vector<16x128xf32>
    tpu.vector_store %arg8[%c0_17, %c0_18], %21 {strides = array<i32>} : memref<16x128xf32, #tpu.memory_space<vmem>>, vector<16x128xf32>,
    return
  }
  func.func @transform_0(%arg0: i32) -> (i32, i32) {
    %c0_i32 = arith.constant 0 : i32
    %c0_i32_0 = arith.constant 0 : i32
    return %arg0, %c0_i32 : i32, i32
  }
  func.func @transform_1(%arg0: i32) -> (i32, i32) {
    %c0_i32 = arith.constant 0 : i32
    %c0_i32_0 = arith.constant 0 : i32
    %c0_i32_1 = arith.constant 0 : i32
    return %c0_i32, %c0_i32_0 : i32, i32
  }
  func.func @transform_2(%arg0: i32) -> (i32, i32) {
    %c0_i32 = arith.constant 0 : i32
    %c0_i32_0 = arith.constant 0 : i32
    %c0_i32_1 = arith.constant 0 : i32
    return %c0_i32, %c0_i32_0 : i32, i32
  }
  func.func @transform_3(%arg0: i32) -> (i32, i32) {
    %c0_i32 = arith.constant 0 : i32
    %c0_i32_0 = arith.constant 0 : i32
    %c0_i32_1 = arith.constant 0 : i32
    return %c0_i32, %c0_i32_0 : i32, i32
  }
  func.func @transform_4(%arg0: i32) -> (i32, i32) {
    %c0_i32 = arith.constant 0 : i32
    %c0_i32_0 = arith.constant 0 : i32
    %c0_i32_1 = arith.constant 0 : i32
    return %c0_i32, %c0_i32_0 : i32, i32
  }
  func.func @transform_5(%arg0: i32) -> (i32, i32) {
    %c0_i32 = arith.constant 0 : i32
    %c0_i32_0 = arith.constant 0 : i32
    %c0_i32_1 = arith.constant 0 : i32
    return %c0_i32, %c0_i32_0 : i32, i32
  }
  func.func @transform_6(%arg0: i32) -> (i32, i32) {
    %c0_i32 = arith.constant 0 : i32
    %c0_i32_0 = arith.constant 0 : i32
    %c0_i32_1 = arith.constant 0 : i32
    return %c0_i32, %c0_i32_0 : i32, i32
  }
  func.func @transform_7(%arg0: i32) -> (i32, i32) {
    %c0_i32 = arith.constant 0 : i32
    %c0_i32_0 = arith.constant 0 : i32
    return %arg0, %c0_i32 : i32, i32
  }
}

</mosaic_0001>

<llo_original>
// kernel: tpu_custom_call.1
$region0: #{tpu_custom_call.1}
  #allocation0 [shape = 'u32[]', space=smem, size = 0x4, offset = 0x4, fixed_abs, tag = 'smem constant byte address 0x4 - core index']
  #allocation1 [shape = 'u32[144,128]{1,0:T(1,128)}', space=vmem, size = 0x12000, scoped, tag = 'internal scratch']
  %s0 = inlined_call_operand.hbm [shape: f32[16,32], index: 0, kind: input, shape index: {}]
  %s1 = inlined_call_operand.hbm [shape: f32[32,128], index: 1, kind: input, shape index: {}]
  %s2 = inlined_call_operand.vmem [shape: f32[1,128], index: 2, kind: input, shape index: {}]
  %s3 = inlined_call_operand.hbm [shape: f32[128,128], index: 3, kind: input, shape index: {}]
  %s4 = inlined_call_operand.vmem [shape: f32[1,128], index: 4, kind: input, shape index: {}]
  %s5 = inlined_call_operand.hbm [shape: f32[128,128], index: 5, kind: input, shape index: {}]
  %s6 = inlined_call_operand.vmem [shape: f32[1,128], index: 6, kind: input, shape index: {}]
  %s7 = inlined_call_operand.hbm [shape: f32[16,128], index: 7, kind: output, shape index: {}]
  %s8 = sld [smem:[#allocation0]]
  $region54: #{tpu_custom_call.1} parent=0
    _
  %s10 = ssub.s32 1, %s8
  %s11 = scalar_select 0, %s10, %s8
  $region1: #{tpu_custom_call.1} parent=0
    #allocation2 [shape = 'u8[8192]{0}', space=vmem, size = 0x2000, scoped, tag = 'input window, operand 0, single buffered']
    #allocation3 [shape = 's32[1]{0}', space=sflag, size = 0x4, scoped, tag = 'scoped memory for tpu_custom_call.1']
    #allocation4 [shape = 's32[1]{0}', space=sflag, size = 0x4, scoped, tag = 'scoped memory for tpu_custom_call.1']
    #allocation5 [shape = 'u8[16384]{0}', space=vmem, size = 0x4000, scoped, tag = 'input window, operand 1, single buffered']
    #allocation6 [shape = 's32[1]{0}', space=sflag, size = 0x4, scoped, tag = 'scoped memory for tpu_custom_call.1']
    #allocation7 [shape = 'u8[65536]{0}', space=vmem, size = 0x10000, scoped, tag = 'input window, operand 3, single buffered']
    #allocation8 [shape = 'u8[65536]{0}', space=vmem, size = 0x10000, scoped, tag = 'input window, operand 5, single buffered']
    #allocation9 [shape = 's32[1]{0}', space=sflag, size = 0x4, scoped, tag = 'scoped memory for tpu_custom_call.1']
    #allocation10 [shape = 'u8[8192]{0}', space=vmem, size = 0x2000, scoped, tag = 'output window, operand 0, single buffered']
    %12 = vsyncpa [#allocation3], 0
    %13 = vsyncpa [#allocation6], 0
    %14 = vsyncpa [#allocation9], 0
    %15 = vsyncpa [#allocation4], 0
    // Predicated region
    $region2: #{tpu_custom_call.1} parent=1 // pred_check
      _
    $region3: #{tpu_custom_call.1} parent=1 // pred_check_branch
      %17 = sbr.rel (0) target = $region5
    $region4: #{tpu_custom_call.1} parent=1 // pred_region
      %s19 = ssub.s32 256, 256
      %20 = vsyncadd [#allocation3], %s19
      %s21 = sshll.u32 [#allocation2], 4
      %s22 = int_to_ptr.vmem [resolvable:$true] %s21
      %27 = dma.hbm_to_vmem [thread:$0]  %s0, 256, %s22, [#allocation3], 128, 128, 8
    $region5: #{tpu_custom_call.1} parent=1 // pred_fallthru
      _
    // Predicated region
    $region6: #{tpu_custom_call.1} parent=1 // pred_check
      _
    $region7: #{tpu_custom_call.1} parent=1 // pred_check_branch
      %29 = sbr.rel (0) target = $region9
    $region8: #{tpu_custom_call.1} parent=1 // pred_region
      %s31 = ssub.s32 512, 512
      %32 = vsyncadd [#allocation6], %s31
      %s33 = sshll.u32 [#allocation5], 4
      %s34 = int_to_ptr.vmem [resolvable:$true] %s33
      %39 = dma.hbm_to_vmem [thread:$0]  %s1, 512, %s34, [#allocation6], 128, 128, 8
    $region9: #{tpu_custom_call.1} parent=1 // pred_fallthru
      _
    // Predicated region
    $region10: #{tpu_custom_call.1} parent=1 // pred_check
      _
    $region11: #{tpu_custom_call.1} parent=1 // pred_check_branch
      %41 = sbr.rel (0) target = $region13
    $region12: #{tpu_custom_call.1} parent=1 // pred_region
      _
    $region13: #{tpu_custom_call.1} parent=1 // pred_fallthru
      _
    // Predicated region
    $region14: #{tpu_custom_call.1} parent=1 // pred_check
      _
    $region15: #{tpu_custom_call.1} parent=1 // pred_check_branch
      %43 = sbr.rel (0) target = $region17
    $region16: #{tpu_custom_call.1} parent=1 // pred_region
      %s45 = ssub.s32 2048, 2048
      %46 = vsyncadd [#allocation6], %s45
      %s47 = sshll.u32 [#allocation7], 4
      %s48 = int_to_ptr.vmem [resolvable:$true] %s47
      %53 = dma.hbm_to_vmem [thread:$0]  %s3, 2048, %s48, [#allocation6], 128, 128, 8
    $region17: #{tpu_custom_call.1} parent=1 // pred_fallthru
      _
    // Predicated region
    $region18: #{tpu_custom_call.1} parent=1 // pred_check
      _
    $region19: #{tpu_custom_call.1} parent=1 // pred_check_branch
      %55 = sbr.rel (0) target = $region21
    $region20: #{tpu_custom_call.1} parent=1 // pred_region
      _
    $region21: #{tpu_custom_call.1} parent=1 // pred_fallthru
      _
    // Predicated region
    $region22: #{tpu_custom_call.1} parent=1 // pred_check
      _
    $region23: #{tpu_custom_call.1} parent=1 // pred_check_branch
      %57 = sbr.rel (0) target = $region25
    $region24: #{tpu_custom_call.1} parent=1 // pred_region
      %s59 = ssub.s32 2048, 2048
      %60 = vsyncadd [#allocation9], %s59
      %s61 = sshll.u32 [#allocation8], 4
      %s62 = int_to_ptr.vmem [resolvable:$true] %s61
      %67 = dma.hbm_to_vmem [thread:$0]  %s5, 2048, %s62, [#allocation9], 128, 128, 8
    $region25: #{tpu_custom_call.1} parent=1 // pred_fallthru
      _
    // Predicated region
    $region26: #{tpu_custom_call.1} parent=1 // pred_check
      _
    $region27: #{tpu_custom_call.1} parent=1 // pred_check_branch
      %69 = sbr.rel (0) target = $region29
    $region28: #{tpu_custom_call.1} parent=1 // pred_region
      _
    $region29: #{tpu_custom_call.1} parent=1 // pred_fallthru
      _
    // Predicated region
    $region30: #{tpu_custom_call.1} parent=1 // pred_check
      _
    $region31: #{tpu_custom_call.1} parent=1 // pred_check_branch
      %71 = sbr.rel (0) target = $region33
    $region32: #{tpu_custom_call.1} parent=1 // pred_region
      %72 = dma.done [#allocation3], 256
    $region33: #{tpu_custom_call.1} parent=1 // pred_fallthru
      _
    // Predicated region
    $region34: #{tpu_custom_call.1} parent=1 // pred_check
      _
    $region35: #{tpu_custom_call.1} parent=1 // pred_check_branch
      %74 = sbr.rel (0) target = $region37
    $region36: #{tpu_custom_call.1} parent=1 // pred_region
      %75 = dma.done [#allocation6], 512
    $region37: #{tpu_custom_call.1} parent=1 // pred_fallthru
      _
    // Predicated region
    $region38: #{tpu_custom_call.1} parent=1 // pred_check
      _
    $region39: #{tpu_custom_call.1} parent=1 // pred_check_branch
      %77 = sbr.rel (0) target = $region41
    $region40: #{tpu_custom_call.1} parent=1 // pred_region
      %78 = dma.done [#allocation6], 2048
    $region41: #{tpu_custom_call.1} parent=1 // pred_fallthru
      _
    // Predicated region
    $region42: #{tpu_custom_call.1} parent=1 // pred_check
      _
    $region43: #{tpu_custom_call.1} parent=1 // pred_check_branch
      %80 = sbr.rel (0) target = $region45
    $region44: #{tpu_custom_call.1} parent=1 // pred_region
      %81 = dma.done [#allocation9], 2048
    $region45: #{tpu_custom_call.1} parent=1 // pred_fallthru
      _
    %v82 = vld [vmem:[#allocation2] sm:$0xff]
    %v83 = vld [vmem:[#allocation2 + $0x8] sm:$0xff]
    %v84 = vld [vmem:[#allocation5] sm:$0xff]
    %v85 = vld [vmem:[#allocation5 + $0x8] sm:$0xff]
    %v86 = vld [vmem:[#allocation5 + $0x10] sm:$0xff]
    %v87 = vld [vmem:[#allocation5 + $0x18] sm:$0xff]
    %v88 = vld [vmem:[%s2] sm:$0x1]
    %v90 = vlaneseq
    %v91 = vshrl.u32 %v90, 7
    %v92 = vsub.s32 0, %v91
    %v93 = vrot.slane %v88, %v92
    %vm95 = vcmask 261120
    %v97 = vsel %vm95, %v82, 0
    %v100 = vsel %vm95, %v83, 0
    %102 = vmatprep.subr.mxu0 0.0
    %103 = vmatpush1.msra.mxu0 %v84
    %104 = vmatprep.subr.mxu0 0.0
    %105 = vmatpush1.msra.mxu0 %v85
    %106 = vmatprep.subr.mxu0 0.0
    %107 = vmatpush1.msra.mxu0 %v86
    %108 = vmatprep.subr.mxu0 0.0
    %109 = vmatpush1.msra.mxu0 %v87
    %110 = vmatprep.subr.mxu0 0.0
    %111 = vmatpush1.msra.mxu0 0.0
    %112 = vmatprep.subr.mxu0 0.0
    %113 = vmatpush1.msra.mxu0 0.0
    %114 = vmatprep.subr.mxu0 0.0
    %115 = vmatpush1.msra.mxu0 0.0
    %116 = vmatprep.subr.mxu0 0.0
    %117 = vmatpush1.msra.mxu0 0.0
    %118 = vmatprep.subr.mxu0 0.0
    %119 = vmatpush1.msra.mxu0 0.0
    %120 = vmatprep.subr.mxu0 0.0
    %121 = vmatpush1.msra.mxu0 0.0
    %122 = vmatprep.subr.mxu0 0.0
    %123 = vmatpush1.msra.mxu0 0.0
    %124 = vmatprep.subr.mxu0 0.0
    %125 = vmatpush1.msra.mxu0 0.0
    %126 = vmatprep.subr.mxu0 0.0
    %127 = vmatpush1.msra.mxu0 0.0
    %128 = vmatprep.subr.mxu0 0.0
    %129 = vmatpush1.msra.mxu0 0.0
    %130 = vmatprep.subr.mxu0 0.0
    %131 = vmatpush1.msra.mxu0 0.0
    %132 = vmatprep.subr.mxu0 0.0
    %133 = vmatpush1.msra.mxu0 0.0
    %134 = vmatprep.subr.mxu0 0.0
    %135 = vmatpush1.msra.mxu0 0.0
    %136 = vmatprep.subr.mxu0 0.0
    %137 = vmatpush1.msra.mxu0 0.0
    %138 = vmatprep.subr.mxu0 0.0
    %139 = vmatpush1.msra.mxu0 0.0
    %140 = vmatprep.subr.mxu0 0.0
    %141 = vmatpush1.msra.mxu0 0.0
    %142 = vmatprep.subr.mxu0 0.0
    %143 = vmatpush1.msra.mxu0 0.0
    %144 = vmatprep.subr.mxu0 0.0
    %145 = vmatpush1.msra.mxu0 0.0
    %146 = vmatprep.subr.mxu0 0.0
    %147 = vmatpush1.msra.mxu0 0.0
    %148 = vmatprep.subr.mxu0 0.0
    %149 = vmatpush1.msra.mxu0 0.0
    %150 = vmatprep.subr.mxu0 0.0
    %151 = vmatpush1.msra.mxu0 0.0
    %152 = vmatprep.subr.mxu0 0.0
    %153 = vmatpush1.msra.mxu0 0.0
    %154 = vmatprep.subr.mxu0 0.0
    %155 = vmatpush1.msra.mxu0 0.0
    %156 = vmatprep.subr.mxu0 0.0
    %157 = vmatpush1.msra.mxu0 0.0
    %158 = vmatprep.subr.mxu0 0.0
    %159 = vmatpush1.msra.mxu0 0.0
    %160 = vmatprep.subr.mxu0 0.0
    %161 = vmatpush1.msra.mxu0 0.0
    %162 = vmatprep.subr.mxu0 0.0
    %163 = vmatpush1.msra.mxu0 0.0
    %164 = vmatprep.subr.mxu0 0.0
    %165 = vmatpush1.msra.mxu0 0.0
    %166 = vmatprep.mubr.f32.mxu0 0.0
    %167 = vmatmul.mubr.f32.gmra.mrb[0].mxu0 %v97
    %v168 = vpop.f32.mrb[0].mxu0
    %v169 = vadd.f32 %v93, %v168
    %v170 = vpop.f32.mrb[0].mxu0
    %171 = vmatprep.mubr.f32.mxu0 0.0
    %172 = vmatmul.mubr.f32.gmra.mrb[0].mxu0 %v100
    %v173 = vpop.f32.mrb[0].mxu0
    %v174 = vadd.f32 %v93, %v173
    %v175 = vpop.f32.mrb[0].mxu0
    %176 = vdwg.mxu0
    %v177 = vmul.f32 %v169, 0.2
    %v178 = vmul.f32 %v174, 0.2
    %v179 = vmax.f32 %v169, %v177
    %v180 = vmax.f32 %v174, %v178
    %v181 = vld [vmem:[#allocation7] sm:$0xff]
    %v182 = vld [vmem:[#allocation7 + $0x8] sm:$0xff]
    %v183 = vld [vmem:[#allocation7 + $0x10] sm:$0xff]
    %v184 = vld [vmem:[#allocation7 + $0x18] sm:$0xff]
    %v185 = vld [vmem:[#allocation7 + $0x20] sm:$0xff]
    %v186 = vld [vmem:[#allocation7 + $0x28] sm:$0xff]
    %v187 = vld [vmem:[#allocation7 + $0x30] sm:$0xff]
    %v188 = vld [vmem:[#allocation7 + $0x38] sm:$0xff]
    %v189 = vld [vmem:[#allocation7 + $0x40] sm:$0xff]
    %v190 = vld [vmem:[#allocation7 + $0x48] sm:$0xff]
    %v191 = vld [vmem:[#allocation7 + $0x50] sm:$0xff]
    %v192 = vld [vmem:[#allocation7 + $0x58] sm:$0xff]
    %v193 = vld [vmem:[#allocation7 + $0x60] sm:$0xff]
    %v194 = vld [vmem:[#allocation7 + $0x68] sm:$0xff]
    %v195 = vld [vmem:[#allocation7 + $0x70] sm:$0xff]
    %v196 = vld [vmem:[#allocation7 + $0x78] sm:$0xff]
    %v197 = vld [vmem:[%s4] sm:$0x1]
    %v199 = vlaneseq
    %v200 = vshrl.u32 %v199, 7
    %v201 = vsub.s32 0, %v200
    %v202 = vrot.slane %v197, %v201
    %204 = vmatprep.subr.mxu0 0.0
    %205 = vmatpush1.msra.mxu0 %v181
    %206 = vmatprep.subr.mxu0 0.0
    %207 = vmatpush1.msra.mxu0 %v182
    %208 = vmatprep.subr.mxu0 0.0
    %209 = vmatpush1.msra.mxu0 %v183
    %210 = vmatprep.subr.mxu0 0.0
    %211 = vmatpush1.msra.mxu0 %v184
    %212 = vmatprep.subr.mxu0 0.0
    %213 = vmatpush1.msra.mxu0 %v185
    %214 = vmatprep.subr.mxu0 0.0
    %215 = vmatpush1.msra.mxu0 %v186
    %216 = vmatprep.subr.mxu0 0.0
    %217 = vmatpush1.msra.mxu0 %v187
    %218 = vmatprep.subr.mxu0 0.0
    %219 = vmatpush1.msra.mxu0 %v188
    %220 = vmatprep.subr.mxu0 0.0
    %221 = vmatpush1.msra.mxu0 %v189
    %222 = vmatprep.subr.mxu0 0.0
    %223 = vmatpush1.msra.mxu0 %v190
    %224 = vmatprep.subr.mxu0 0.0
    %225 = vmatpush1.msra.mxu0 %v191
    %226 = vmatprep.subr.mxu0 0.0
    %227 = vmatpush1.msra.mxu0 %v192
    %228 = vmatprep.subr.mxu0 0.0
    %229 = vmatpush1.msra.mxu0 %v193
    %230 = vmatprep.subr.mxu0 0.0
    %231 = vmatpush1.msra.mxu0 %v194
    %232 = vmatprep.subr.mxu0 0.0
    %233 = vmatpush1.msra.mxu0 %v195
    %234 = vmatprep.subr.mxu0 0.0
    %235 = vmatpush1.msra.mxu0 %v196
    %236 = vmatprep.subr.mxu0 0.0
    %237 = vmatpush1.msra.mxu0 0.0
    %238 = vmatprep.subr.mxu0 0.0
    %239 = vmatpush1.msra.mxu0 0.0
    %240 = vmatprep.subr.mxu0 0.0
    %241 = vmatpush1.msra.mxu0 0.0
    %242 = vmatprep.subr.mxu0 0.0
    %243 = vmatpush1.msra.mxu0 0.0
    %244 = vmatprep.subr.mxu0 0.0
    %245 = vmatpush1.msra.mxu0 0.0
    %246 = vmatprep.subr.mxu0 0.0
    %247 = vmatpush1.msra.mxu0 0.0
    %248 = vmatprep.subr.mxu0 0.0
    %249 = vmatpush1.msra.mxu0 0.0
    %250 = vmatprep.subr.mxu0 0.0
    %251 = vmatpush1.msra.mxu0 0.0
    %252 = vmatprep.subr.mxu0 0.0
    %253 = vmatpush1.msra.mxu0 0.0
    %254 = vmatprep.subr.mxu0 0.0
    %255 = vmatpush1.msra.mxu0 0.0
    %256 = vmatprep.subr.mxu0 0.0
    %257 = vmatpush1.msra.mxu0 0.0
    %258 = vmatprep.subr.mxu0 0.0
    %259 = vmatpush1.msra.mxu0 0.0
    %260 = vmatprep.subr.mxu0 0.0
    %261 = vmatpush1.msra.mxu0 0.0
    %262 = vmatprep.subr.mxu0 0.0
    %263 = vmatpush1.msra.mxu0 0.0
    %264 = vmatprep.subr.mxu0 0.0
    %265 = vmatpush1.msra.mxu0 0.0
    %266 = vmatprep.subr.mxu0 0.0
    %267 = vmatpush1.msra.mxu0 0.0
    %268 = vmatprep.mubr.f32.mxu0 0.0
    %269 = vmatmul.mubr.f32.gmra.mrb[0].mxu0 %v179
    %v270 = vpop.f32.mrb[0].mxu0
    %v271 = vadd.f32 %v202, %v270
    %v272 = vpop.f32.mrb[0].mxu0
    %273 = vmatprep.mubr.f32.mxu0 0.0
    %274 = vmatmul.mubr.f32.gmra.mrb[0].mxu0 %v180
    %v275 = vpop.f32.mrb[0].mxu0
    %v276 = vadd.f32 %v202, %v275
    %v277 = vpop.f32.mrb[0].mxu0
    %278 = vdwg.mxu0
    %v279 = vmul.f32 %v271, 0.2
    %v280 = vmul.f32 %v276, 0.2
    %v281 = vmax.f32 %v271, %v279
    %v282 = vmax.f32 %v276, %v280
    %v283 = vld [vmem:[#allocation8] sm:$0xff]
    %v284 = vld [vmem:[#allocation8 + $0x8] sm:$0xff]
    %v285 = vld [vmem:[#allocation8 + $0x10] sm:$0xff]
    %v286 = vld [vmem:[#allocation8 + $0x18] sm:$0xff]
    %v287 = vld [vmem:[#allocation8 + $0x20] sm:$0xff]
    %v288 = vld [vmem:[#allocation8 + $0x28] sm:$0xff]
    %v289 = vld [vmem:[#allocation8 + $0x30] sm:$0xff]
    %v290 = vld [vmem:[#allocation8 + $0x38] sm:$0xff]
    %v291 = vld [vmem:[#allocation8 + $0x40] sm:$0xff]
    %v292 = vld [vmem:[#allocation8 + $0x48] sm:$0xff]
    %v293 = vld [vmem:[#allocation8 + $0x50] sm:$0xff]
    %v294 = vld [vmem:[#allocation8 + $0x58] sm:$0xff]
    %v295 = vld [vmem:[#allocation8 + $0x60] sm:$0xff]
    %v296 = vld [vmem:[#allocation8 + $0x68] sm:$0xff]
    %v297 = vld [vmem:[#allocation8 + $0x70] sm:$0xff]
    %v298 = vld [vmem:[#allocation8 + $0x78] sm:$0xff]
    %v299 = vld [vmem:[%s6] sm:$0x1]
    %v301 = vlaneseq
    %v302 = vshrl.u32 %v301, 7
    %v303 = vsub.s32 0, %v302
    %v304 = vrot.slane %v299, %v303
    %306 = vmatprep.subr.mxu0 0.0
    %307 = vmatpush1.msra.mxu0 %v283
    %308 = vmatprep.subr.mxu0 0.0
    %309 = vmatpush1.msra.mxu0 %v284
    %310 = vmatprep.subr.mxu0 0.0
    %311 = vmatpush1.msra.mxu0 %v285
    %312 = vmatprep.subr.mxu0 0.0
    %313 = vmatpush1.msra.mxu0 %v286
    %314 = vmatprep.subr.mxu0 0.0
    %315 = vmatpush1.msra.mxu0 %v287
    %316 = vmatprep.subr.mxu0 0.0
    %317 = vmatpush1.msra.mxu0 %v288
    %318 = vmatprep.subr.mxu0 0.0
    %319 = vmatpush1.msra.mxu0 %v289
    %320 = vmatprep.subr.mxu0 0.0
    %321 = vmatpush1.msra.mxu0 %v290
    %322 = vmatprep.subr.mxu0 0.0
    %323 = vmatpush1.msra.mxu0 %v291
    %324 = vmatprep.subr.mxu0 0.0
    %325 = vmatpush1.msra.mxu0 %v292
    %326 = vmatprep.subr.mxu0 0.0
    %327 = vmatpush1.msra.mxu0 %v293
    %328 = vmatprep.subr.mxu0 0.0
    %329 = vmatpush1.msra.mxu0 %v294
    %330 = vmatprep.subr.mxu0 0.0
    %331 = vmatpush1.msra.mxu0 %v295
    %332 = vmatprep.subr.mxu0 0.0
    %333 = vmatpush1.msra.mxu0 %v296
    %334 = vmatprep.subr.mxu0 0.0
    %335 = vmatpush1.msra.mxu0 %v297
    %336 = vmatprep.subr.mxu0 0.0
    %337 = vmatpush1.msra.mxu0 %v298
    %338 = vmatprep.subr.mxu0 0.0
    %339 = vmatpush1.msra.mxu0 0.0
    %340 = vmatprep.subr.mxu0 0.0
    %341 = vmatpush1.msra.mxu0 0.0
    %342 = vmatprep.subr.mxu0 0.0
    %343 = vmatpush1.msra.mxu0 0.0
    %344 = vmatprep.subr.mxu0 0.0
    %345 = vmatpush1.msra.mxu0 0.0
    %346 = vmatprep.subr.mxu0 0.0
    %347 = vmatpush1.msra.mxu0 0.0
    %348 = vmatprep.subr.mxu0 0.0
    %349 = vmatpush1.msra.mxu0 0.0
    %350 = vmatprep.subr.mxu0 0.0
    %351 = vmatpush1.msra.mxu0 0.0
    %352 = vmatprep.subr.mxu0 0.0
    %353 = vmatpush1.msra.mxu0 0.0
    %354 = vmatprep.subr.mxu0 0.0
    %355 = vmatpush1.msra.mxu0 0.0
    %356 = vmatprep.subr.mxu0 0.0
    %357 = vmatpush1.msra.mxu0 0.0
    %358 = vmatprep.subr.mxu0 0.0
    %359 = vmatpush1.msra.mxu0 0.0
    %360 = vmatprep.subr.mxu0 0.0
    %361 = vmatpush1.msra.mxu0 0.0
    %362 = vmatprep.subr.mxu0 0.0
    %363 = vmatpush1.msra.mxu0 0.0
    %364 = vmatprep.subr.mxu0 0.0
    %365 = vmatpush1.msra.mxu0 0.0
    %366 = vmatprep.subr.mxu0 0.0
    %367 = vmatpush1.msra.mxu0 0.0
    %368 = vmatprep.subr.mxu0 0.0
    %369 = vmatpush1.msra.mxu0 0.0
    %370 = vmatprep.mubr.f32.mxu0 0.0
    %371 = vmatmul.mubr.f32.gmra.mrb[0].mxu0 %v281
    %v372 = vpop.f32.mrb[0].mxu0
    %v373 = vadd.f32 %v304, %v372
    %v374 = vpop.f32.mrb[0].mxu0
    %375 = vmatprep.mubr.f32.mxu0 0.0
    %376 = vmatmul.mubr.f32.gmra.mrb[0].mxu0 %v282
    %v377 = vpop.f32.mrb[0].mxu0
    %v378 = vadd.f32 %v304, %v377
    %v379 = vpop.f32.mrb[0].mxu0
    %380 = vdwg.mxu0
    %381 = vst [vmem:[#allocation10] sm:$0xff] %v373
    %382 = vst [vmem:[#allocation10 + $0x8] sm:$0xff] %v378
    // Predicated region
    $region46: #{tpu_custom_call.1} parent=1 // pred_check
      _
    $region47: #{tpu_custom_call.1} parent=1 // pred_check_branch
      %384 = sbr.rel (0) target = $region49
    $region48: #{tpu_custom_call.1} parent=1 // pred_region
      %s386 = ssub.s32 256, 256
      %387 = vsyncadd [#allocation4], %s386
      %s388 = sshll.u32 [#allocation10], 4
      %s389 = int_to_ptr.vmem [resolvable:$true] %s388
      %394 = dma.vmem_to_hbm [thread:$0]  %s389, 256, %s7, [#allocation4], 128, 128, 8
    $region49: #{tpu_custom_call.1} parent=1 // pred_fallthru
      _
    // Predicated region
    $region50: #{tpu_custom_call.1} parent=1 // pred_check
      _
    $region51: #{tpu_custom_call.1} parent=1 // pred_check_branch
      %396 = sbr.rel (0) target = $region53
    $region52: #{tpu_custom_call.1} parent=1 // pred_region
      %397 = dma.done [#allocation4], 256
    $region53: #{tpu_custom_call.1} parent=1 // pred_fallthru
      _
    %398 = vsyncpa [#allocation3], 1
    %399 = vsyncpa [#allocation6], 1
    %400 = vsyncpa [#allocation9], 1
    %401 = vsyncpa [#allocation4], 1

// kernel: tpu_custom_call.1
$region0: #{tpu_custom_call.1}
  #allocation0 [shape = 'u32[]', space=smem, size = 0x4, offset = 0x4, fixed_abs, tag = 'smem constant byte address 0x4 - core index']
  #allocation1 [shape = 'u32[144,128]{1,0:T(1,128)}', space=vmem, size = 0x12000, scoped, tag = 'internal scratch']
  %s0 = inlined_call_operand.hbm [shape: f32[16,32], index: 0, kind: input, shape index: {}]
  %s1 = inlined_call_operand.hbm [shape: f32[32,128], index: 1, kind: input, shape index: {}]
  %s2 = inlined_call_operand.vmem [shape: f32[1,128], index: 2, kind: input, shape index: {}]
  %s3 = inlined_call_operand.hbm [shape: f32[128,128], index: 3, kind: input, shape index: {}]
  %s4 = inlined_call_operand.vmem [shape: f32[1,128], index: 4, kind: input, shape index: {}]
  %s5 = inlined_call_operand.hbm [shape: f32[128,128], index: 5, kind: input, shape index: {}]
  %s6 = inlined_call_operand.vmem [shape: f32[1,128], index: 6, kind: input, shape index: {}]
  %s7 = inlined_call_operand.hbm [shape: f32[16,128], index: 7, kind: output, shape index: {}]
  %s8 = sld [smem:[#allocation0]]
  $region54: #{tpu_custom_call.1} parent=0
    _
  %s10 = ssub.s32 1, %s8
  %s11 = scalar_select 0, %s10, %s8
  $region1: #{tpu_custom_call.1} parent=0
    #allocation2 [shape = 'u8[8192]{0}', space=vmem, size = 0x2000, scoped, tag = 'input window, operand 0, single buffered']
    #allocation3 [shape = 's32[1]{0}', space=sflag, size = 0x4, scoped, tag = 'scoped memory for tpu_custom_call.1']
    #allocation4 [shape = 's32[1]{0}', space=sflag, size = 0x4, scoped, tag = 'scoped memory for tpu_custom_call.1']
    #allocation5 [shape = 'u8[16384]{0}', space=vmem, size = 0x4000, scoped, tag = 'input window, operand 1, single buffered']
    #allocation6 [shape = 's32[1]{0}', space=sflag, size = 0x4, scoped, tag = 'scoped memory for tpu_custom_call.1']
    #allocation7 [shape = 'u8[65536]{0}', space=vmem, size = 0x10000, scoped, tag = 'input window, operand 3, single buffered']
    #allocation8 [shape = 'u8[65536]{0}', space=vmem, size = 0x10000, scoped, tag = 'input window, operand 5, single buffered']
    #allocation9 [shape = 's32[1]{0}', space=sflag, size = 0x4, scoped, tag = 'scoped memory for tpu_custom_call.1']
    #allocation10 [shape = 'u8[8192]{0}', space=vmem, size = 0x2000, scoped, tag = 'output window, operand 0, single buffered']
    %12 = vsyncpa [#allocation3], 0
    %13 = vsyncpa [#allocation6], 0
    %14 = vsyncpa [#allocation9], 0
    %15 = vsyncpa [#allocation4], 0
    // Predicated region
    $region2: #{tpu_custom_call.1} parent=1 // pred_check
      _
    $region3: #{tpu_custom_call.1} parent=1 // pred_check_branch
      %17 = sbr.rel (0) target = $region5
    $region4: #{tpu_custom_call.1} parent=1 // pred_region
      %s19 = ssub.s32 256, 256
      %20 = vsyncadd [#allocation3], %s19
      %s21 = sshll.u32 [#allocation2], 4
      %s22 = int_to_ptr.vmem [resolvable:$true] %s21
      %27 = dma.hbm_to_vmem [thread:$0]  %s0, 256, %s22, [#allocation3], 128, 128, 8
    $region5: #{tpu_custom_call.1} parent=1 // pred_fallthru
      _
    // Predicated region
    $region6: #{tpu_custom_call.1} parent=1 // pred_check
      _
    $region7: #{tpu_custom_call.1} parent=1 // pred_check_branch
      %29 = sbr.rel (0) target = $region9
    $region8: #{tpu_custom_call.1} parent=1 // pred_region
      %s31 = ssub.s32 512, 512
      %32 = vsyncadd [#allocation6], %s31
      %s33 = sshll.u32 [#allocation5], 4
      %s34 = int_to_ptr.vmem [resolvable:$true] %s33
      %39 = dma.hbm_to_vmem [thread:$0]  %s1, 512, %s34, [#allocation6], 128, 128, 8
    $region9: #{tpu_custom_call.1} parent=1 // pred_fallthru
      _
    // Predicated region
    $region10: #{tpu_custom_call.1} parent=1 // pred_check
      _
    $region11: #{tpu_custom_call.1} parent=1 // pred_check_branch
      %41 = sbr.rel (0) target = $region13
    $region12: #{tpu_custom_call.1} parent=1 // pred_region
      _
    $region13: #{tpu_custom_call.1} parent=1 // pred_fallthru
      _
    // Predicated region
    $region14: #{tpu_custom_call.1} parent=1 // pred_check
      _
    $region15: #{tpu_custom_call.1} parent=1 // pred_check_branch
      %43 = sbr.rel (0) target = $region17
    $region16: #{tpu_custom_call.1} parent=1 // pred_region
      %s45 = ssub.s32 2048, 2048
      %46 = vsyncadd [#allocation6], %s45
      %s47 = sshll.u32 [#allocation7], 4
      %s48 = int_to_ptr.vmem [resolvable:$true] %s47
      %53 = dma.hbm_to_vmem [thread:$0]  %s3, 2048, %s48, [#allocation6], 128, 128, 8
    $region17: #{tpu_custom_call.1} parent=1 // pred_fallthru
      _
    // Predicated region
    $region18: #{tpu_custom_call.1} parent=1 // pred_check
      _
    $region19: #{tpu_custom_call.1} parent=1 // pred_check_branch
      %55 = sbr.rel (0) target = $region21
    $region20: #{tpu_custom_call.1} parent=1 // pred_region
      _
    $region21: #{tpu_custom_call.1} parent=1 // pred_fallthru
      _
    // Predicated region
    $region22: #{tpu_custom_call.1} parent=1 // pred_check
      _
    $region23: #{tpu_custom_call.1} parent=1 // pred_check_branch
      %57 = sbr.rel (0) target = $region25
    $region24: #{tpu_custom_call.1} parent=1 // pred_region
      %s59 = ssub.s32 2048, 2048
      %60 = vsyncadd [#allocation9], %s59
      %s61 = sshll.u32 [#allocation8], 4
      %s62 = int_to_ptr.vmem [resolvable:$true] %s61
      %67 = dma.hbm_to_vmem [thread:$0]  %s5, 2048, %s62, [#allocation9], 128, 128, 8
    $region25: #{tpu_custom_call.1} parent=1 // pred_fallthru
      _
    // Predicated region
    $region26: #{tpu_custom_call.1} parent=1 // pred_check
      _
    $region27: #{tpu_custom_call.1} parent=1 // pred_check_branch
      %69 = sbr.rel (0) target = $region29
    $region28: #{tpu_custom_call.1} parent=1 // pred_region
      _
    $region29: #{tpu_custom_call.1} parent=1 // pred_fallthru
      _
    // Predicated region
    $region30: #{tpu_custom_call.1} parent=1 // pred_check
      _
    $region31: #{tpu_custom_call.1} parent=1 // pred_check_branch
      %71 = sbr.rel (0) target = $region33
    $region32: #{tpu_custom_call.1} parent=1 // pred_region
      %72 = dma.done [#allocation3], 256
    $region33: #{tpu_custom_call.1} parent=1 // pred_fallthru
      _
    // Predicated region
    $region34: #{tpu_custom_call.1} parent=1 // pred_check
      _
    $region35: #{tpu_custom_call.1} parent=1 // pred_check_branch
      %74 = sbr.rel (0) target = $region37
    $region36: #{tpu_custom_call.1} parent=1 // pred_region
      %75 = dma.done [#allocation6], 512
    $region37: #{tpu_custom_call.1} parent=1 // pred_fallthru
      _
    // Predicated region
    $region38: #{tpu_custom_call.1} parent=1 // pred_check
      _
    $region39: #{tpu_custom_call.1} parent=1 // pred_check_branch
      %77 = sbr.rel (0) target = $region41
    $region40: #{tpu_custom_call.1} parent=1 // pred_region
      %78 = dma.done [#allocation6], 2048
    $region41: #{tpu_custom_call.1} parent=1 // pred_fallthru
      _
    // Predicated region
    $region42: #{tpu_custom_call.1} parent=1 // pred_check
      _
    $region43: #{tpu_custom_call.1} parent=1 // pred_check_branch
      %80 = sbr.rel (0) target = $region45
    $region44: #{tpu_custom_call.1} parent=1 // pred_region
      %81 = dma.done [#allocation9], 2048
    $region45: #{tpu_custom_call.1} parent=1 // pred_fallthru
      _
    %v82 = vld [vmem:[#allocation2] sm:$0xff]
    %v83 = vld [vmem:[#allocation2 + $0x8] sm:$0xff]
    %v84 = vld [vmem:[#allocation5] sm:$0xff]
    %v85 = vld [vmem:[#allocation5 + $0x8] sm:$0xff]
    %v86 = vld [vmem:[#allocation5 + $0x10] sm:$0xff]
    %v87 = vld [vmem:[#allocation5 + $0x18] sm:$0xff]
    %v88 = vld [vmem:[%s2] sm:$0x1]
    %v90 = vlaneseq
    %v91 = vshrl.u32 %v90, 7
    %v92 = vsub.s32 0, %v91
    %v93 = vrot.slane %v88, %v92
    %vm95 = vcmask 261120
    %v97 = vsel %vm95, %v82, 0
    %v100 = vsel %vm95, %v83, 0
    %102 = vmatprep.subr.mxu0 0.0
    %103 = vmatpush1.msra.mxu0 %v84
    %104 = vmatprep.subr.mxu0 0.0
    %105 = vmatpush1.msra.mxu0 %v85
    %106 = vmatprep.subr.mxu0 0.0
    %107 = vmatpush1.msra.mxu0 %v86
    %108 = vmatprep.subr.mxu0 0.0
    %109 = vmatpush1.msra.mxu0 %v87
    %110 = vmatprep.subr.mxu0 0.0
    %111 = vmatpush1.msra.mxu0 0.0
    %112 = vmatprep.subr.mxu0 0.0
    %113 = vmatpush1.msra.mxu0 0.0
    %114 = vmatprep.subr.mxu0 0.0
    %115 = vmatpush1.msra.mxu0 0.0
    %116 = vmatprep.subr.mxu0 0.0
    %117 = vmatpush1.msra.mxu0 0.0
    %118 = vmatprep.subr.mxu0 0.0
    %119 = vmatpush1.msra.mxu0 0.0
    %120 = vmatprep.subr.mxu0 0.0
    %121 = vmatpush1.msra.mxu0 0.0
    %122 = vmatprep.subr.mxu0 0.0
    %123 = vmatpush1.msra.mxu0 0.0
    %124 = vmatprep.subr.mxu0 0.0
    %125 = vmatpush1.msra.mxu0 0.0
    %126 = vmatprep.subr.mxu0 0.0
    %127 = vmatpush1.msra.mxu0 0.0
    %128 = vmatprep.subr.mxu0 0.0
    %129 = vmatpush1.msra.mxu0 0.0
    %130 = vmatprep.subr.mxu0 0.0
    %131 = vmatpush1.msra.mxu0 0.0
    %132 = vmatprep.subr.mxu0 0.0
    %133 = vmatpush1.msra.mxu0 0.0
    %134 = vmatprep.subr.mxu0 0.0
    %135 = vmatpush1.msra.mxu0 0.0
    %136 = vmatprep.subr.mxu0 0.0
    %137 = vmatpush1.msra.mxu0 0.0
    %138 = vmatprep.subr.mxu0 0.0
    %139 = vmatpush1.msra.mxu0 0.0
    %140 = vmatprep.subr.mxu0 0.0
    %141 = vmatpush1.msra.mxu0 0.0
    %142 = vmatprep.subr.mxu0 0.0
    %143 = vmatpush1.msra.mxu0 0.0
    %144 = vmatprep.subr.mxu0 0.0
    %145 = vmatpush1.msra.mxu0 0.0
    %146 = vmatprep.subr.mxu0 0.0
    %147 = vmatpush1.msra.mxu0 0.0
    %148 = vmatprep.subr.mxu0 0.0
    %149 = vmatpush1.msra.mxu0 0.0
    %150 = vmatprep.subr.mxu0 0.0
    %151 = vmatpush1.msra.mxu0 0.0
    %152 = vmatprep.subr.mxu0 0.0
    %153 = vmatpush1.msra.mxu0 0.0
    %154 = vmatprep.subr.mxu0 0.0
    %155 = vmatpush1.msra.mxu0 0.0
    %156 = vmatprep.subr.mxu0 0.0
    %157 = vmatpush1.msra.mxu0 0.0
    %158 = vmatprep.subr.mxu0 0.0
    %159 = vmatpush1.msra.mxu0 0.0
    %160 = vmatprep.subr.mxu0 0.0
    %161 = vmatpush1.msra.mxu0 0.0
    %162 = vmatprep.subr.mxu0 0.0
    %163 = vmatpush1.msra.mxu0 0.0
    %164 = vmatprep.subr.mxu0 0.0
    %165 = vmatpush1.msra.mxu0 0.0
    %166 = vmatprep.mubr.f32.mxu0 0.0
    %167 = vmatmul.mubr.f32.gmra.mrb[0].mxu0 %v97
    %v168 = vpop.f32.mrb[0].mxu0
    %v169 = vadd.f32 %v93, %v168
    %v170 = vpop.f32.mrb[0].mxu0
    %171 = vmatprep.mubr.f32.mxu0 0.0
    %172 = vmatmul.mubr.f32.gmra.mrb[0].mxu0 %v100
    %v173 = vpop.f32.mrb[0].mxu0
    %v174 = vadd.f32 %v93, %v173
    %v175 = vpop.f32.mrb[0].mxu0
    %176 = vdwg.mxu0
    %v177 = vmul.f32 %v169, 0.2
    %v178 = vmul.f32 %v174, 0.2
    %v179 = vmax.f32 %v169, %v177
    %v180 = vmax.f32 %v174, %v178
    %v181 = vld [vmem:[#allocation7] sm:$0xff]
    %v182 = vld [vmem:[#allocation7 + $0x8] sm:$0xff]
    %v183 = vld [vmem:[#allocation7 + $0x10] sm:$0xff]
    %v184 = vld [vmem:[#allocation7 + $0x18] sm:$0xff]
    %v185 = vld [vmem:[#allocation7 + $0x20] sm:$0xff]
    %v186 = vld [vmem:[#allocation7 + $0x28] sm:$0xff]
    %v187 = vld [vmem:[#allocation7 + $0x30] sm:$0xff]
    %v188 = vld [vmem:[#allocation7 + $0x38] sm:$0xff]
    %v189 = vld [vmem:[#allocation7 + $0x40] sm:$0xff]
    %v190 = vld [vmem:[#allocation7 + $0x48] sm:$0xff]
    %v191 = vld [vmem:[#allocation7 + $0x50] sm:$0xff]
    %v192 = vld [vmem:[#allocation7 + $0x58] sm:$0xff]
    %v193 = vld [vmem:[#allocation7 + $0x60] sm:$0xff]
    %v194 = vld [vmem:[#allocation7 + $0x68] sm:$0xff]
    %v195 = vld [vmem:[#allocation7 + $0x70] sm:$0xff]
    %v196 = vld [vmem:[#allocation7 + $0x78] sm:$0xff]
    %v197 = vld [vmem:[%s4] sm:$0x1]
    %v199 = vlaneseq
    %v200 = vshrl.u32 %v199, 7
    %v201 = vsub.s32 0, %v200
    %v202 = vrot.slane %v197, %v201
    %204 = vmatprep.subr.mxu0 0.0
    %205 = vmatpush1.msra.mxu0 %v181
    %206 = vmatprep.subr.mxu0 0.0
    %207 = vmatpush1.msra.mxu0 %v182
    %208 = vmatprep.subr.mxu0 0.0
    %209 = vmatpush1.msra.mxu0 %v183
    %210 = vmatprep.subr.mxu0 0.0
    %211 = vmatpush1.msra.mxu0 %v184
    %212 = vmatprep.subr.mxu0 0.0
    %213 = vmatpush1.msra.mxu0 %v185
    %214 = vmatprep.subr.mxu0 0.0
    %215 = vmatpush1.msra.mxu0 %v186
    %216 = vmatprep.subr.mxu0 0.0
    %217 = vmatpush1.msra.mxu0 %v187
    %218 = vmatprep.subr.mxu0 0.0
    %219 = vmatpush1.msra.mxu0 %v188
    %220 = vmatprep.subr.mxu0 0.0
    %221 = vmatpush1.msra.mxu0 %v189
    %222 = vmatprep.subr.mxu0 0.0
    %223 = vmatpush1.msra.mxu0 %v190
    %224 = vmatprep.subr.mxu0 0.0
    %225 = vmatpush1.msra.mxu0 %v191
    %226 = vmatprep.subr.mxu0 0.0
    %227 = vmatpush1.msra.mxu0 %v192
    %228 = vmatprep.subr.mxu0 0.0
    %229 = vmatpush1.msra.mxu0 %v193
    %230 = vmatprep.subr.mxu0 0.0
    %231 = vmatpush1.msra.mxu0 %v194
    %232 = vmatprep.subr.mxu0 0.0
    %233 = vmatpush1.msra.mxu0 %v195
    %234 = vmatprep.subr.mxu0 0.0
    %235 = vmatpush1.msra.mxu0 %v196
    %236 = vmatprep.subr.mxu0 0.0
    %237 = vmatpush1.msra.mxu0 0.0
    %238 = vmatprep.subr.mxu0 0.0
    %239 = vmatpush1.msra.mxu0 0.0
    %240 = vmatprep.subr.mxu0 0.0
    %241 = vmatpush1.msra.mxu0 0.0
    %242 = vmatprep.subr.mxu0 0.0
    %243 = vmatpush1.msra.mxu0 0.0
    %244 = vmatprep.subr.mxu0 0.0
    %245 = vmatpush1.msra.mxu0 0.0
    %246 = vmatprep.subr.mxu0 0.0
    %247 = vmatpush1.msra.mxu0 0.0
    %248 = vmatprep.subr.mxu0 0.0
    %249 = vmatpush1.msra.mxu0 0.0
    %250 = vmatprep.subr.mxu0 0.0
    %251 = vmatpush1.msra.mxu0 0.0
    %252 = vmatprep.subr.mxu0 0.0
    %253 = vmatpush1.msra.mxu0 0.0
    %254 = vmatprep.subr.mxu0 0.0
    %255 = vmatpush1.msra.mxu0 0.0
    %256 = vmatprep.subr.mxu0 0.0
    %257 = vmatpush1.msra.mxu0 0.0
    %258 = vmatprep.subr.mxu0 0.0
    %259 = vmatpush1.msra.mxu0 0.0
    %260 = vmatprep.subr.mxu0 0.0
    %261 = vmatpush1.msra.mxu0 0.0
    %262 = vmatprep.subr.mxu0 0.0
    %263 = vmatpush1.msra.mxu0 0.0
    %264 = vmatprep.subr.mxu0 0.0
    %265 = vmatpush1.msra.mxu0 0.0
    %266 = vmatprep.subr.mxu0 0.0
    %267 = vmatpush1.msra.mxu0 0.0
    %268 = vmatprep.mubr.f32.mxu0 0.0
    %269 = vmatmul.mubr.f32.gmra.mrb[0].mxu0 %v179
    %v270 = vpop.f32.mrb[0].mxu0
    %v271 = vadd.f32 %v202, %v270
    %v272 = vpop.f32.mrb[0].mxu0
    %273 = vmatprep.mubr.f32.mxu0 0.0
    %274 = vmatmul.mubr.f32.gmra.mrb[0].mxu0 %v180
    %v275 = vpop.f32.mrb[0].mxu0
    %v276 = vadd.f32 %v202, %v275
    %v277 = vpop.f32.mrb[0].mxu0
    %278 = vdwg.mxu0
    %v279 = vmul.f32 %v271, 0.2
    %v280 = vmul.f32 %v276, 0.2
    %v281 = vmax.f32 %v271, %v279
    %v282 = vmax.f32 %v276, %v280
    %v283 = vld [vmem:[#allocation8] sm:$0xff]
    %v284 = vld [vmem:[#allocation8 + $0x8] sm:$0xff]
    %v285 = vld [vmem:[#allocation8 + $0x10] sm:$0xff]
    %v286 = vld [vmem:[#allocation8 + $0x18] sm:$0xff]
    %v287 = vld [vmem:[#allocation8 + $0x20] sm:$0xff]
    %v288 = vld [vmem:[#allocation8 + $0x28] sm:$0xff]
    %v289 = vld [vmem:[#allocation8 + $0x30] sm:$0xff]
    %v290 = vld [vmem:[#allocation8 + $0x38] sm:$0xff]
    %v291 = vld [vmem:[#allocation8 + $0x40] sm:$0xff]
    %v292 = vld [vmem:[#allocation8 + $0x48] sm:$0xff]
    %v293 = vld [vmem:[#allocation8 + $0x50] sm:$0xff]
    %v294 = vld [vmem:[#allocation8 + $0x58] sm:$0xff]
    %v295 = vld [vmem:[#allocation8 + $0x60] sm:$0xff]
    %v296 = vld [vmem:[#allocation8 + $0x68] sm:$0xff]
    %v297 = vld [vmem:[#allocation8 + $0x70] sm:$0xff]
    %v298 = vld [vmem:[#allocation8 + $0x78] sm:$0xff]
    %v299 = vld [vmem:[%s6] sm:$0x1]
    %v301 = vlaneseq
    %v302 = vshrl.u32 %v301, 7
    %v303 = vsub.s32 0, %v302
    %v304 = vrot.slane %v299, %v303
    %306 = vmatprep.subr.mxu0 0.0
    %307 = vmatpush1.msra.mxu0 %v283
    %308 = vmatprep.subr.mxu0 0.0
    %309 = vmatpush1.msra.mxu0 %v284
    %310 = vmatprep.subr.mxu0 0.0
    %311 = vmatpush1.msra.mxu0 %v285
    %312 = vmatprep.subr.mxu0 0.0
    %313 = vmatpush1.msra.mxu0 %v286
    %314 = vmatprep.subr.mxu0 0.0
    %315 = vmatpush1.msra.mxu0 %v287
    %316 = vmatprep.subr.mxu0 0.0
    %317 = vmatpush1.msra.mxu0 %v288
    %318 = vmatprep.subr.mxu0 0.0
    %319 = vmatpush1.msra.mxu0 %v289
    %320 = vmatprep.subr.mxu0 0.0
    %321 = vmatpush1.msra.mxu0 %v290
    %322 = vmatprep.subr.mxu0 0.0
    %323 = vmatpush1.msra.mxu0 %v291
    %324 = vmatprep.subr.mxu0 0.0
    %325 = vmatpush1.msra.mxu0 %v292
    %326 = vmatprep.subr.mxu0 0.0
    %327 = vmatpush1.msra.mxu0 %v293
    %328 = vmatprep.subr.mxu0 0.0
    %329 = vmatpush1.msra.mxu0 %v294
    %330 = vmatprep.subr.mxu0 0.0
    %331 = vmatpush1.msra.mxu0 %v295
    %332 = vmatprep.subr.mxu0 0.0
    %333 = vmatpush1.msra.mxu0 %v296
    %334 = vmatprep.subr.mxu0 0.0
    %335 = vmatpush1.msra.mxu0 %v297
    %336 = vmatprep.subr.mxu0 0.0
    %337 = vmatpush1.msra.mxu0 %v298
    %338 = vmatprep.subr.mxu0 0.0
    %339 = vmatpush1.msra.mxu0 0.0
    %340 = vmatprep.subr.mxu0 0.0
    %341 = vmatpush1.msra.mxu0 0.0
    %342 = vmatprep.subr.mxu0 0.0
    %343 = vmatpush1.msra.mxu0 0.0
    %344 = vmatprep.subr.mxu0 0.0
    %345 = vmatpush1.msra.mxu0 0.0
    %346 = vmatprep.subr.mxu0 0.0
    %347 = vmatpush1.msra.mxu0 0.0
    %348 = vmatprep.subr.mxu0 0.0
    %349 = vmatpush1.msra.mxu0 0.0
    %350 = vmatprep.subr.mxu0 0.0
    %351 = vmatpush1.msra.mxu0 0.0
    %352 = vmatprep.subr.mxu0 0.0
    %353 = vmatpush1.msra.mxu0 0.0
    %354 = vmatprep.subr.mxu0 0.0
    %355 = vmatpush1.msra.mxu0 0.0
    %356 = vmatprep.subr.mxu0 0.0
    %357 = vmatpush1.msra.mxu0 0.0
    %358 = vmatprep.subr.mxu0 0.0
    %359 = vmatpush1.msra.mxu0 0.0
    %360 = vmatprep.subr.mxu0 0.0
    %361 = vmatpush1.msra.mxu0 0.0
    %362 = vmatprep.subr.mxu0 0.0
    %363 = vmatpush1.msra.mxu0 0.0
    %364 = vmatprep.subr.mxu0 0.0
    %365 = vmatpush1.msra.mxu0 0.0
    %366 = vmatprep.subr.mxu0 0.0
    %367 = vmatpush1.msra.mxu0 0.0
    %368 = vmatprep.subr.mxu0 0.0
    %369 = vmatpush1.msra.mxu0 0.0
    %370 = vmatprep.mubr.f32.mxu0 0.0
    %371 = vmatmul.mubr.f32.gmra.mrb[0].mxu0 %v281
    %v372 = vpop.f32.mrb[0].mxu0
    %v373 = vadd.f32 %v304, %v372
    %v374 = vpop.f32.mrb[0].mxu0
    %375 = vmatprep.mubr.f32.mxu0 0.0
    %376 = vmatmul.mubr.f32.gmra.mrb[0].mxu0 %v282
    %v377 = vpop.f32.mrb[0].mxu0
    %v378 = vadd.f32 %v304, %v377
    %v379 = vpop.f32.mrb[0].mxu0
    %380 = vdwg.mxu0
    %381 = vst [vmem:[#allocation10] sm:$0xff] %v373
    %382 = vst [vmem:[#allocation10 + $0x8] sm:$0xff] %v378
    // Predicated region
    $region46: #{tpu_custom_call.1} parent=1 // pred_check
      _
    $region47: #{tpu_custom_call.1} parent=1 // pred_check_branch
      %384 = sbr.rel (0) target = $region49
    $region48: #{tpu_custom_call.1} parent=1 // pred_region
      %s386 = ssub.s32 256, 256
      %387 = vsyncadd [#allocation4], %s386
      %s388 = sshll.u32 [#allocation10], 4
      %s389 = int_to_ptr.vmem [resolvable:$true] %s388
      %394 = dma.vmem_to_hbm [thread:$0]  %s389, 256, %s7, [#allocation4], 128, 128, 8
    $region49: #{tpu_custom_call.1} parent=1 // pred_fallthru
      _
    // Predicated region
    $region50: #{tpu_custom_call.1} parent=1 // pred_check
      _
    $region51: #{tpu_custom_call.1} parent=1 // pred_check_branch
      %396 = sbr.rel (0) target = $region53
    $region52: #{tpu_custom_call.1} parent=1 // pred_region
      %397 = dma.done [#allocation4], 256
    $region53: #{tpu_custom_call.1} parent=1 // pred_fallthru
      _
    %398 = vsyncpa [#allocation3], 1
    %399 = vsyncpa [#allocation6], 1
    %400 = vsyncpa [#allocation9], 1
    %401 = vsyncpa [#allocation4], 1

</llo_original>
